<compile_context>
chip_gen: v7x
topology: tpu7x:2x2x1
jax: 0.10.0
libtpu: 0.0.40
codegen_flags: <defaults>
</compile_context>

<pallas_src>
import jax
import jax.numpy as jnp
from jax.experimental import pallas as pl
from jax.experimental.pallas import tpu as pltpu

# ----------------------------- configuration -------------------------------
B = 2          # batch
C_IN = 3       # image channels (effnet expects RGB)
H = W = 32     # spatial size
KSIZE = 3      # stem conv kernel
STRIDE = 2
PAD = 1
C_MID = 32     # stem conv output channels
N_CLS = 1000   # effnet classifier width (LSTM input size)
HID = 7        # LSTM hidden size

H_OUT = (H + 2 * PAD - KSIZE) // STRIDE + 1   # 16
W_OUT = (W + 2 * PAD - KSIZE) // STRIDE + 1   # 16
HW = H_OUT * W_OUT                            # 256
KKC = KSIZE * KSIZE * C_IN                    # 27
KKC_PAD = 32                                  # lane-friendly contraction dim (27 -> 32); col 27 = bias lane
GSLOT = 16                                    # lanes per gate slot: [frac(7) | vert(7) | 0 0]
GPAD = 128                                    # lane-dense gate / output width
M_ROWS = B * HW                               # 512  (batch folded into matmul M)


# ----------------------------- Pallas kernel -------------------------------
def fused_effnet_lstm_kernel(p_ref, cw_ref, pool_ref, wf_ref, bf_ref, out_ref):
    """Whole forward pass in one kernel.

    p_ref   : (B*HW, KKC_PAD) bf16  im2col patches; col 27 == 1.0 (bias lane), 28..31 == 0
    cw_ref  : (KKC_PAD, C_MID) bf16 stem conv weight; row 27 == conv bias, rows 28..31 == 0
    pool_ref: (B, B*HW)        f32  block-diagonal 1/HW pooling matrix (folds the mean)
    wf_ref  : (C_MID, GPAD)    bf16 fused classifier+gate weight (fc_w @ gates_w), slots of 16:
                                    [i_frac|i_vert|0] [g_frac|g_vert|0] [o_frac|o_vert|0] [zeros]
    bf_ref  : (1, GPAD)        f32  fused bias (fc_b @ gates_w + gates_b)
    out_ref : (B, GPAD)        f32  dense packed output: [h(16) | c(16) | zeros(96)]
    """
    # Stem conv (bias folded into the bf16 bias lane) as one MXU matmul, then SiLU in f32.
    y = jnp.dot(p_ref[...], cw_ref[...],
                preferred_element_type=jnp.float32)                     # (B*HW, C_MID) f32
    y = y * jax.nn.sigmoid(y)                                           # SiLU (f32 VPU/EUP)

    # Global average pool as an MXU matmul (1/HW scale folded into pool matrix).
    pooled = jnp.dot(pool_ref[...], y,
                     preferred_element_type=jnp.float32)                # (B, C_MID) f32

    # Classifier + all i/g/o gates of BOTH LSTMs in ONE fused lane-dense matmul
    # (fc_w @ gates_w precomputed offline in pack_params -> only 32x128 weights DMA'd).
    gates = jnp.dot(pooled.astype(jnp.bfloat16), wf_ref[...],
                    preferred_element_type=jnp.float32) + bf_ref[...]   # (B, GPAD) f32

    i_g = jax.nn.sigmoid(gates[:, 0:GSLOT])                             # (B, 16)
    g_g = jnp.tanh(gates[:, GSLOT:2 * GSLOT])                           # (B, 16)
    o_g = jax.nn.sigmoid(gates[:, 2 * GSLOT:3 * GSLOT])                 # (B, 16)

    # seq_len == 1 and h0 = c0 = 0  =>  forget-gate term f * c0 == 0 exactly,
    # so w_f / b_f are neither computed nor DMA'd.
    c = i_g * g_g                                                        # (B, 16)
    h = o_g * jnp.tanh(c)                                                # (B, 16)

    # Single dense 128-lane store (no masked vst tails).
    out_ref[...] = jnp.concatenate(
        [h, c, jnp.zeros((B, GPAD - 2 * GSLOT), jnp.float32)], axis=1)


# ------------------------------ glue helpers -------------------------------
def _im2col(x_nchw):
    """(B, C, H, W) -> (B*HW, KKC_PAD) bf16; patch order (kh, kw, cin); col 27 = 1.0 bias lane."""
    # TODO(synk): im2col stays in the (fused) XLA wrapper; an in-kernel version
    # (9 shifted-slice matmuls on the padded NHWC image) would save one ~32 KiB
    # HBM round trip but needs strided in-kernel slicing that is not worth the risk here.
    x_nhwc = jnp.transpose(x_nchw, (0, 2, 3, 1)).astype(jnp.float32)
    xp = jnp.pad(x_nhwc, ((0, 0), (PAD, PAD), (PAD, PAD), (0, 0)))
    cols = []
    for kh in range(KSIZE):
        for kw in range(KSIZE):
            cols.append(xp[:, kh:kh + STRIDE * H_OUT:STRIDE,
                           kw:kw + STRIDE * W_OUT:STRIDE, :])            # (B,Ho,Wo,C)
    patches = jnp.stack(cols, axis=3).reshape(B, HW, KKC)                # (B,HW,27)
    ones = jnp.ones((B, HW, 1), jnp.float32)                             # bias lane (col 27)
    zeros = jnp.zeros((B, HW, KKC_PAD - KKC - 1), jnp.float32)           # cols 28..31
    patches = jnp.concatenate([patches, ones, zeros], axis=-1)           # (B,HW,32)
    return patches.reshape(M_ROWS, KKC_PAD).astype(jnp.bfloat16)         # (512, 32) bf16


# Advisory cost estimate for XLA scheduling around the tiny custom call.
_FLOPS = 2 * M_ROWS * KKC_PAD * C_MID + 2 * B * M_ROWS * C_MID + 2 * B * C_MID * GPAD
_TRANS = M_ROWS * C_MID + 4 * B * GSLOT
_BYTES = (M_ROWS * KKC_PAD * 2 + KKC_PAD * C_MID * 2 + B * M_ROWS * 4
          + C_MID * GPAD * 2 + GPAD * 4 + B * GPAD * 4)


@jax.jit
def effnet_model_forward(x_nchw, pk):
    """Mirrors EffnetModel.forward: returns ((out_f,(h_f,c_f)), (out_v,(h_v,c_v))).

    NOTE: valid only for the module's actual usage pattern: seq_len == 1
    (x.unsqueeze(0)) with zero initial LSTM state; the forget gate is dropped.
    """
    patches = _im2col(x_nchw)

    packed = pl.pallas_call(
        fused_effnet_lstm_kernel,
        out_shape=jax.ShapeDtypeStruct((B, GPAD), jnp.float32),
        in_specs=[pl.BlockSpec(memory_space=pltpu.MemorySpace.VMEM)] * 5,
        out_specs=pl.BlockSpec(memory_space=pltpu.MemorySpace.VMEM),
        cost_estimate=pl.CostEstimate(flops=_FLOPS, transcendentals=_TRANS,
                                      bytes_accessed=_BYTES),
    )(patches, pk["conv_w"], pk["pool"], pk["w_fused"], pk["b_fused"])

    # Unpack lane-dense result: [h_frac(7) h_vert(7) .. | c_frac(7) c_vert(7) ..]
    h_f = packed[:, 0:HID]
    h_v = packed[:, HID:2 * HID]
    c_f = packed[:, GSLOT:GSLOT + HID]
    c_v = packed[:, GSLOT + HID:GSLOT + 2 * HID]

    # torch: x.unsqueeze(0) -> seq_len 1; LSTM output == h_n for a 1-step sequence.
    frac = (h_f[None, :, :], (h_f[None, :, :], c_f[None, :, :]))
    vert = (h_v[None, :, :], (h_v[None, :, :], c_v[None, :, :]))
    return frac, vert


# --------------------------- deterministic params --------------------------
def _init_lstm(key):
    ks = jax.random.split(key, 8)
    s_w = 1.0 / jnp.sqrt(jnp.float32(N_CLS))
    s_b = 0.05
    # NOTE: if real PyTorch LSTM weights were loaded, weight_ih_l0 ((4H, in))
    # must be transposed per gate and b_ih + b_hh summed per gate.
    return {
        "w_i": s_w * jax.random.normal(ks[0], (N_CLS, HID), jnp.float32),
        "w_f": s_w * jax.random.normal(ks[1], (N_CLS, HID), jnp.float32),  # unused: c0 == 0
        "w_g": s_w * jax.random.normal(ks[2], (N_CLS, HID), jnp.float32),
        "w_o": s_w * jax.random.normal(ks[3], (N_CLS, HID), jnp.float32),
        "b_i": s_b * jax.random.normal(ks[4], (1, HID), jnp.float32),
        "b_f": s_b * jax.random.normal(ks[5], (1, HID), jnp.float32),      # unused: c0 == 0
        "b_g": s_b * jax.random.normal(ks[6], (1, HID), jnp.float32),
        "b_o": s_b * jax.random.normal(ks[7], (1, HID), jnp.float32),
    }


def init_params(key):
    kc, kcb, kf, kfb, kl1, kl2 = jax.random.split(key, 6)
    return {
        # TODO(synk): the real `effnet` backbone is an injected external module;
        # a deterministic synthetic stem + classifier producing 1000 logits
        # stands in for it here.
        "conv_w": 0.1 * jax.random.normal(kc, (KKC, C_MID), jnp.float32),
        "conv_b": 0.05 * jax.random.normal(kcb, (1, C_MID), jnp.float32),
        "fc_w": (1.0 / jnp.sqrt(jnp.float32(C_MID)))
                * jax.random.normal(kf, (C_MID, N_CLS), jnp.float32),
        "fc_b": 0.05 * jax.random.normal(kfb, (1, N_CLS), jnp.float32),
        "lstm_fracture": _init_lstm(kl1),
        "lstm_vertebrae": _init_lstm(kl2),
    }


def pack_params(p):
    """One-time offline repack into lane-dense, zero-padded, pre-fused kernel operands."""
    # Stem conv weight with conv bias folded into the bias lane (row 27); bf16 for the MXU.
    conv_w = jnp.zeros((KKC_PAD, C_MID), jnp.float32)
    conv_w = conv_w.at[:KKC, :].set(p["conv_w"])
    conv_w = conv_w.at[KKC, :].set(p["conv_b"][0])
    conv_w = conv_w.astype(jnp.bfloat16)

    # Block-diagonal pooling matrix with the 1/HW mean-scale folded in (f32, tiny).
    pool = jnp.zeros((B, M_ROWS), jnp.float32)
    for b in range(B):
        pool = pool.at[b, b * HW:(b + 1) * HW].set(1.0 / HW)

    # Concatenate i/g/o gates of both LSTMs into one (N_CLS, 128) matrix.
    # Forget gates are intentionally NOT packed (f * c0 == 0 for a 1-step LSTM
    # with zero initial state) -> no wasted weight DMA / compute.
    gw = jnp.zeros((N_CLS, GPAD), jnp.float32)
    gb = jnp.zeros((1, GPAD), jnp.float32)
    lf, lv = p["lstm_fracture"], p["lstm_vertebrae"]
    for slot, gate in enumerate(("i", "g", "o")):
        base = slot * GSLOT
        gw = gw.at[:, base:base + HID].set(lf["w_" + gate])
        gw = gw.at[:, base + HID:base + 2 * HID].set(lv["w_" + gate])
        gb = gb.at[:, base:base + HID].set(lf["b_" + gate])
        gb = gb.at[:, base + HID:base + 2 * HID].set(lv["b_" + gate])

    # Algebraic fold of the 32->1000 classifier into the 1000->128 gate matmul
    # (offline, f32): removes ~640 KiB of per-call weight DMA from the kernel.
    w_fused = (p["fc_w"] @ gw).astype(jnp.bfloat16)          # (C_MID, GPAD) bf16
    b_fused = p["fc_b"] @ gw + gb                            # (1, GPAD)     f32

    return {"conv_w": conv_w, "pool": pool, "w_fused": w_fused, "b_fused": b_fused}


# ---------------------------------- main ------------------------------------
if __name__ == "__main__":
    key = jax.random.PRNGKey(0)
    k_x, k_p = jax.random.split(key)
    x = jax.random.normal(k_x, (B, C_IN, H, W), jnp.float32)   # NCHW, like PyTorch
    params = init_params(k_p)
    packed_params = pack_params(params)

    (out_f, (h_f, c_f)), (out_v, (h_v, c_v)) = effnet_model_forward(x, packed_params)
    jax.block_until_ready((out_f, h_f, c_f, out_v, h_v, c_v))

    assert out_f.shape == (1, B, HID) and h_f.shape == (1, B, HID)
    assert out_v.shape == (1, B, HID) and c_v.shape == (1, B, HID)
    print("KERNEL_OK")
</pallas_src>

<mosaic_0001>
module attributes {stable_mosaic.version = 11 : i64} {
  func.func @fused_effnet_lstm_kernel(%arg0: memref<512x32xbf16, #tpu.memory_space<vmem>>, %arg1: memref<32x32xbf16, #tpu.memory_space<vmem>>, %arg2: memref<2x512xf32, #tpu.memory_space<vmem>>, %arg3: memref<32x128xbf16, #tpu.memory_space<vmem>>, %arg4: memref<1x128xf32, #tpu.memory_space<vmem>>, %arg5: memref<2x128xf32, #tpu.memory_space<vmem>>) attributes {dimension_semantics = [], scalar_prefetch = 0 : i64, scratch_operands = 0 : i64, tpu.core_type = #tpu.core_type<tc>} {
    %c0 = arith.constant 0 : index
    %c0_0 = arith.constant 0 : index
    %0 = vector.load %arg0[%c0, %c0_0] : memref<512x32xbf16, #tpu.memory_space<vmem>>, vector<512x32xbf16>
    %c0_1 = arith.constant 0 : index
    %c0_2 = arith.constant 0 : index
    %1 = vector.load %arg1[%c0_1, %c0_2] : memref<32x32xbf16, #tpu.memory_space<vmem>>, vector<32x32xbf16>
    %cst = arith.constant dense<0.000000e+00> : vector<512x32xf32>
    %2 = tpu.matmul %0, %1, %cst {dimension_numbers = #tpu.dot_dimension_numbers<[1], [0], [0], [1], [0, 0, 1, 1], [], []>} : vector<512x32xbf16>, vector<32x32xbf16>, vector<512x32xf32> -> vector<512x32xf32>
    %3 = arith.negf %2 : vector<512x32xf32>
    %4 = math.exp %3 : vector<512x32xf32>
    %cst_3 = arith.constant 1.000000e+00 : f32
    %5 = vector.broadcast %cst_3 : f32 to vector<512x32xf32>
    %6 = arith.addf %5, %4 : vector<512x32xf32>
    %7 = arith.divf %5, %6 : vector<512x32xf32>
    %8 = arith.mulf %2, %7 : vector<512x32xf32>
    %c0_4 = arith.constant 0 : index
    %c0_5 = arith.constant 0 : index
    %9 = vector.load %arg2[%c0_4, %c0_5] : memref<2x512xf32, #tpu.memory_space<vmem>>, vector<2x512xf32>
    %cst_6 = arith.constant dense<0.000000e+00> : vector<2x32xf32>
    %10 = tpu.matmul %9, %8, %cst_6 {dimension_numbers = #tpu.dot_dimension_numbers<[1], [0], [0], [1], [0, 0, 1, 1], [], []>} : vector<2x512xf32>, vector<512x32xf32>, vector<2x32xf32> -> vector<2x32xf32>
    %11 = arith.truncf %10 : vector<2x32xf32> to vector<2x32xbf16>
    %c0_7 = arith.constant 0 : index
    %c0_8 = arith.constant 0 : index
    %12 = vector.load %arg3[%c0_7, %c0_8] : memref<32x128xbf16, #tpu.memory_space<vmem>>, vector<32x128xbf16>
    %cst_9 = arith.constant dense<0.000000e+00> : vector<2x128xf32>
    %13 = tpu.matmul %11, %12, %cst_9 {dimension_numbers = #tpu.dot_dimension_numbers<[1], [0], [0], [1], [0, 0, 1, 1], [], []>} : vector<2x32xbf16>, vector<32x128xbf16>, vector<2x128xf32> -> vector<2x128xf32>
    %c0_10 = arith.constant 0 : index
    %c0_11 = arith.constant 0 : index
    %14 = vector.load %arg4[%c0_10, %c0_11] : memref<1x128xf32, #tpu.memory_space<vmem>>, vector<1x128xf32>
    %15 = vector.broadcast %14 : vector<1x128xf32> to vector<2x128xf32>
    %16 = arith.addf %13, %15 : vector<2x128xf32>
    %17 = vector.extract_strided_slice %16 {offsets = [0, 0], sizes = [2, 16], strides = [1, 1]} : vector<2x128xf32> to vector<2x16xf32>
    %18 = arith.negf %17 : vector<2x16xf32>
    %19 = math.exp %18 : vector<2x16xf32>
    %cst_12 = arith.constant 1.000000e+00 : f32
    %20 = vector.broadcast %cst_12 : f32 to vector<2x16xf32>
    %21 = arith.addf %20, %19 : vector<2x16xf32>
    %22 = arith.divf %20, %21 : vector<2x16xf32>
    %23 = vector.extract_strided_slice %16 {offsets = [0, 16], sizes = [2, 16], strides = [1, 1]} : vector<2x128xf32> to vector<2x16xf32>
    %24 = math.tanh %23 : vector<2x16xf32>
    %25 = vector.extract_strided_slice %16 {offsets = [0, 32], sizes = [2, 16], strides = [1, 1]} : vector<2x128xf32> to vector<2x16xf32>
    %26 = arith.negf %25 : vector<2x16xf32>
    %27 = math.exp %26 : vector<2x16xf32>
    %cst_13 = arith.constant 1.000000e+00 : f32
    %28 = vector.broadcast %cst_13 : f32 to vector<2x16xf32>
    %29 = arith.addf %28, %27 : vector<2x16xf32>
    %30 = arith.divf %28, %29 : vector<2x16xf32>
    %31 = arith.mulf %22, %24 : vector<2x16xf32>
    %32 = math.tanh %31 : vector<2x16xf32>
    %33 = arith.mulf %30, %32 : vector<2x16xf32>
    %cst_14 = arith.constant 0.000000e+00 : f32
    %34 = vector.broadcast %cst_14 : f32 to vector<2x96xf32>
    %35 = tpu.concatenate %33, %31, %34 in 1 : vector<2x16xf32>, vector<2x16xf32>, vector<2x96xf32> -> vector<2x128xf32>
    %c0_15 = arith.constant 0 : index
    %c0_16 = arith.constant 0 : index
    %36 = vector.load %arg5[%c0_15, %c0_16] : memref<2x128xf32, #tpu.memory_space<vmem>>, vector<2x128xf32>
    tpu.vector_store %arg5[%c0_15, %c0_16], %35 {strides = array<i32>} : memref<2x128xf32, #tpu.memory_space<vmem>>, vector<2x128xf32>,
    return
  }
}

</mosaic_0001>

<llo_original>
// kernel: effnet_model_forward.1
$region0: #{effnet_model_forward.1}
  #allocation0 [shape = 'u32[]', space=smem, size = 0x4, offset = 0x4, fixed_abs, tag = 'smem constant byte address 0x4 - core index']
  #allocation1 [shape = 'u32[144,128]{1,0:T(1,128)}', space=vmem, size = 0x12000, scoped, tag = 'internal scratch']
  %s0 = inlined_call_operand.vmem [shape: bf16[512,32], index: 0, kind: input, shape index: {}]
  %s1 = inlined_call_operand.vmem [shape: bf16[32,32], index: 1, kind: input, shape index: {}]
  %s2 = inlined_call_operand.vmem [shape: f32[2,512], index: 2, kind: input, shape index: {}]
  %s3 = inlined_call_operand.vmem [shape: bf16[32,128], index: 3, kind: input, shape index: {}]
  %s4 = inlined_call_operand.vmem [shape: f32[1,128], index: 4, kind: input, shape index: {}]
  %s5 = inlined_call_operand.vmem [shape: f32[2,128], index: 5, kind: output, shape index: {}]
  %s6 = sld [smem:[#allocation0]]
  $region30: #{effnet_model_forward.1} parent=0
    _
  %s8 = ssub.s32 1, %s6
  %s9 = scalar_select 0, %s8, %s6
  // Predicated region
  $region2: #{effnet_model_forward.1} parent=0 // pred_check
    _
  $region3: #{effnet_model_forward.1} parent=0 // pred_check_branch
    %11 = sbr.rel (0) target = $region5
  $region4: #{effnet_model_forward.1} parent=0 // pred_region
    _
  $region5: #{effnet_model_forward.1} parent=0 // pred_fallthru
    _
  // Predicated region
  $region6: #{effnet_model_forward.1} parent=0 // pred_check
    _
  $region7: #{effnet_model_forward.1} parent=0 // pred_check_branch
    %13 = sbr.rel (0) target = $region9
  $region8: #{effnet_model_forward.1} parent=0 // pred_region
    _
  $region9: #{effnet_model_forward.1} parent=0 // pred_fallthru
    _
  // Predicated region
  $region10: #{effnet_model_forward.1} parent=0 // pred_check
    _
  $region11: #{effnet_model_forward.1} parent=0 // pred_check_branch
    %15 = sbr.rel (0) target = $region13
  $region12: #{effnet_model_forward.1} parent=0 // pred_region
    _
  $region13: #{effnet_model_forward.1} parent=0 // pred_fallthru
    _
  // Predicated region
  $region14: #{effnet_model_forward.1} parent=0 // pred_check
    _
  $region15: #{effnet_model_forward.1} parent=0 // pred_check_branch
    %17 = sbr.rel (0) target = $region17
  $region16: #{effnet_model_forward.1} parent=0 // pred_region
    _
  $region17: #{effnet_model_forward.1} parent=0 // pred_fallthru
    _
  // Predicated region
  $region18: #{effnet_model_forward.1} parent=0 // pred_check
    _
  $region19: #{effnet_model_forward.1} parent=0 // pred_check_branch
    %19 = sbr.rel (0) target = $region21
  $region20: #{effnet_model_forward.1} parent=0 // pred_region
    _
  $region21: #{effnet_model_forward.1} parent=0 // pred_fallthru
    _
  %v21 = vld [vmem:[%s0] sm:$0xf]
  %v22 = vld [vmem:[%s0 + $0x4] sm:$0xf]
  %v23 = vld [vmem:[%s0 + $0x8] sm:$0xf]
  %v24 = vld [vmem:[%s0 + $0xc] sm:$0xf]
  %v25 = vld [vmem:[%s0 + $0x10] sm:$0xf]
  %v26 = vld [vmem:[%s0 + $0x14] sm:$0xf]
  %v27 = vld [vmem:[%s0 + $0x18] sm:$0xf]
  %v28 = vld [vmem:[%s0 + $0x1c] sm:$0xf]
  %v29 = vld [vmem:[%s0 + $0x20] sm:$0xf]
  %v30 = vld [vmem:[%s0 + $0x24] sm:$0xf]
  %v31 = vld [vmem:[%s0 + $0x28] sm:$0xf]
  %v32 = vld [vmem:[%s0 + $0x2c] sm:$0xf]
  %v33 = vld [vmem:[%s0 + $0x30] sm:$0xf]
  %v34 = vld [vmem:[%s0 + $0x34] sm:$0xf]
  %v35 = vld [vmem:[%s0 + $0x38] sm:$0xf]
  %v36 = vld [vmem:[%s0 + $0x3c] sm:$0xf]
  %v37 = vld [vmem:[%s0 + $0x40] sm:$0xf]
  %v38 = vld [vmem:[%s0 + $0x44] sm:$0xf]
  %v39 = vld [vmem:[%s0 + $0x48] sm:$0xf]
  %v40 = vld [vmem:[%s0 + $0x4c] sm:$0xf]
  %v41 = vld [vmem:[%s0 + $0x50] sm:$0xf]
  %v42 = vld [vmem:[%s0 + $0x54] sm:$0xf]
  %v43 = vld [vmem:[%s0 + $0x58] sm:$0xf]
  %v44 = vld [vmem:[%s0 + $0x5c] sm:$0xf]
  %v45 = vld [vmem:[%s0 + $0x60] sm:$0xf]
  %v46 = vld [vmem:[%s0 + $0x64] sm:$0xf]
  %v47 = vld [vmem:[%s0 + $0x68] sm:$0xf]
  %v48 = vld [vmem:[%s0 + $0x6c] sm:$0xf]
  %v49 = vld [vmem:[%s0 + $0x70] sm:$0xf]
  %v50 = vld [vmem:[%s0 + $0x74] sm:$0xf]
  %v51 = vld [vmem:[%s0 + $0x78] sm:$0xf]
  %v52 = vld [vmem:[%s0 + $0x7c] sm:$0xf]
  %v53 = vld [vmem:[%s0 + $0x80] sm:$0xf]
  %v54 = vld [vmem:[%s0 + $0x84] sm:$0xf]
  %v55 = vld [vmem:[%s0 + $0x88] sm:$0xf]
  %v56 = vld [vmem:[%s0 + $0x8c] sm:$0xf]
  %v57 = vld [vmem:[%s0 + $0x90] sm:$0xf]
  %v58 = vld [vmem:[%s0 + $0x94] sm:$0xf]
  %v59 = vld [vmem:[%s0 + $0x98] sm:$0xf]
  %v60 = vld [vmem:[%s0 + $0x9c] sm:$0xf]
  %v61 = vld [vmem:[%s0 + $0xa0] sm:$0xf]
  %v62 = vld [vmem:[%s0 + $0xa4] sm:$0xf]
  %v63 = vld [vmem:[%s0 + $0xa8] sm:$0xf]
  %v64 = vld [vmem:[%s0 + $0xac] sm:$0xf]
  %v65 = vld [vmem:[%s0 + $0xb0] sm:$0xf]
  %v66 = vld [vmem:[%s0 + $0xb4] sm:$0xf]
  %v67 = vld [vmem:[%s0 + $0xb8] sm:$0xf]
  %v68 = vld [vmem:[%s0 + $0xbc] sm:$0xf]
  %v69 = vld [vmem:[%s0 + $0xc0] sm:$0xf]
  %v70 = vld [vmem:[%s0 + $0xc4] sm:$0xf]
  %v71 = vld [vmem:[%s0 + $0xc8] sm:$0xf]
  %v72 = vld [vmem:[%s0 + $0xcc] sm:$0xf]
  %v73 = vld [vmem:[%s0 + $0xd0] sm:$0xf]
  %v74 = vld [vmem:[%s0 + $0xd4] sm:$0xf]
  %v75 = vld [vmem:[%s0 + $0xd8] sm:$0xf]
  %v76 = vld [vmem:[%s0 + $0xdc] sm:$0xf]
  %v77 = vld [vmem:[%s0 + $0xe0] sm:$0xf]
  %v78 = vld [vmem:[%s0 + $0xe4] sm:$0xf]
  %v79 = vld [vmem:[%s0 + $0xe8] sm:$0xf]
  %v80 = vld [vmem:[%s0 + $0xec] sm:$0xf]
  %v81 = vld [vmem:[%s0 + $0xf0] sm:$0xf]
  %v82 = vld [vmem:[%s0 + $0xf4] sm:$0xf]
  %v83 = vld [vmem:[%s0 + $0xf8] sm:$0xf]
  %v84 = vld [vmem:[%s0 + $0xfc] sm:$0xf]
  %v85 = vld [vmem:[%s1] sm:$0xf]
  %v86 = vld [vmem:[%s1 + $0x4] sm:$0xf]
  %v87 = vld [vmem:[%s1 + $0x8] sm:$0xf]
  %v88 = vld [vmem:[%s1 + $0xc] sm:$0xf]
  %v153 = vunpack.c.l.b16 %v21
  %v154 = vunpack.c.l.b16 %v22
  %v155 = vunpack.c.l.b16 %v23
  %v156 = vunpack.c.l.b16 %v24
  %v157 = vunpack.c.l.b16 %v25
  %v158 = vunpack.c.l.b16 %v26
  %v159 = vunpack.c.l.b16 %v27
  %v160 = vunpack.c.l.b16 %v28
  %v161 = vunpack.c.l.b16 %v29
  %v162 = vunpack.c.l.b16 %v30
  %v163 = vunpack.c.l.b16 %v31
  %v164 = vunpack.c.l.b16 %v32
  %v165 = vunpack.c.l.b16 %v33
  %v166 = vunpack.c.l.b16 %v34
  %v167 = vunpack.c.l.b16 %v35
  %v168 = vunpack.c.l.b16 %v36
  %v169 = vunpack.c.l.b16 %v37
  %v170 = vunpack.c.l.b16 %v38
  %v171 = vunpack.c.l.b16 %v39
  %v172 = vunpack.c.l.b16 %v40
  %v173 = vunpack.c.l.b16 %v41
  %v174 = vunpack.c.l.b16 %v42
  %v175 = vunpack.c.l.b16 %v43
  %v176 = vunpack.c.l.b16 %v44
  %v177 = vunpack.c.l.b16 %v45
  %v178 = vunpack.c.l.b16 %v46
  %v179 = vunpack.c.l.b16 %v47
  %v180 = vunpack.c.l.b16 %v48
  %v181 = vunpack.c.l.b16 %v49
  %v182 = vunpack.c.l.b16 %v50
  %v183 = vunpack.c.l.b16 %v51
  %v184 = vunpack.c.l.b16 %v52
  %v185 = vunpack.c.l.b16 %v53
  %v186 = vunpack.c.l.b16 %v54
  %v187 = vunpack.c.l.b16 %v55
  %v188 = vunpack.c.l.b16 %v56
  %v189 = vunpack.c.l.b16 %v57
  %v190 = vunpack.c.l.b16 %v58
  %v191 = vunpack.c.l.b16 %v59
  %v192 = vunpack.c.l.b16 %v60
  %v193 = vunpack.c.l.b16 %v61
  %v194 = vunpack.c.l.b16 %v62
  %v195 = vunpack.c.l.b16 %v63
  %v196 = vunpack.c.l.b16 %v64
  %v197 = vunpack.c.l.b16 %v65
  %v198 = vunpack.c.l.b16 %v66
  %v199 = vunpack.c.l.b16 %v67
  %v200 = vunpack.c.l.b16 %v68
  %v201 = vunpack.c.l.b16 %v69
  %v202 = vunpack.c.l.b16 %v70
  %v203 = vunpack.c.l.b16 %v71
  %v204 = vunpack.c.l.b16 %v72
  %v205 = vunpack.c.l.b16 %v73
  %v206 = vunpack.c.l.b16 %v74
  %v207 = vunpack.c.l.b16 %v75
  %v208 = vunpack.c.l.b16 %v76
  %v209 = vunpack.c.l.b16 %v77
  %v210 = vunpack.c.l.b16 %v78
  %v211 = vunpack.c.l.b16 %v79
  %v212 = vunpack.c.l.b16 %v80
  %v213 = vunpack.c.l.b16 %v81
  %v214 = vunpack.c.l.b16 %v82
  %v215 = vunpack.c.l.b16 %v83
  %v216 = vunpack.c.l.b16 %v84
  %v217 = vpack.c.b16 %v154, %v153
  %v218 = vpack.c.b16 %v156, %v155
  %v219 = vpack.c.b16 %v158, %v157
  %v220 = vpack.c.b16 %v160, %v159
  %v221 = vpack.c.b16 %v162, %v161
  %v222 = vpack.c.b16 %v164, %v163
  %v223 = vpack.c.b16 %v166, %v165
  %v224 = vpack.c.b16 %v168, %v167
  %v225 = vpack.c.b16 %v170, %v169
  %v226 = vpack.c.b16 %v172, %v171
  %v227 = vpack.c.b16 %v174, %v173
  %v228 = vpack.c.b16 %v176, %v175
  %v229 = vpack.c.b16 %v178, %v177
  %v230 = vpack.c.b16 %v180, %v179
  %v231 = vpack.c.b16 %v182, %v181
  %v232 = vpack.c.b16 %v184, %v183
  %v233 = vpack.c.b16 %v186, %v185
  %v234 = vpack.c.b16 %v188, %v187
  %v235 = vpack.c.b16 %v190, %v189
  %v236 = vpack.c.b16 %v192, %v191
  %v237 = vpack.c.b16 %v194, %v193
  %v238 = vpack.c.b16 %v196, %v195
  %v239 = vpack.c.b16 %v198, %v197
  %v240 = vpack.c.b16 %v200, %v199
  %v241 = vpack.c.b16 %v202, %v201
  %v242 = vpack.c.b16 %v204, %v203
  %v243 = vpack.c.b16 %v206, %v205
  %v244 = vpack.c.b16 %v208, %v207
  %v245 = vpack.c.b16 %v210, %v209
  %v246 = vpack.c.b16 %v212, %v211
  %v247 = vpack.c.b16 %v214, %v213
  %v248 = vpack.c.b16 %v216, %v215
  %v253 = vunpack.c.l.b16 %v85
  %v254 = vunpack.c.l.b16 %v86
  %v255 = vunpack.c.l.b16 %v87
  %v256 = vunpack.c.l.b16 %v88
  %v257 = vpack.c.b16 %v254, %v253
  %v258 = vpack.c.b16 %v256, %v255
  %vm261 = vcmask 261120
  %v263 = vsel %vm261, %v217, 0
  %v266 = vsel %vm261, %v218, 0
  %v269 = vsel %vm261, %v219, 0
  %v272 = vsel %vm261, %v220, 0
  %v275 = vsel %vm261, %v221, 0
  %v278 = vsel %vm261, %v222, 0
  %v281 = vsel %vm261, %v223, 0
  %v284 = vsel %vm261, %v224, 0
  %v287 = vsel %vm261, %v225, 0
  %v290 = vsel %vm261, %v226, 0
  %v293 = vsel %vm261, %v227, 0
  %v296 = vsel %vm261, %v228, 0
  %v299 = vsel %vm261, %v229, 0
  %v302 = vsel %vm261, %v230, 0
  %v305 = vsel %vm261, %v231, 0
  %v308 = vsel %vm261, %v232, 0
  %v311 = vsel %vm261, %v233, 0
  %v314 = vsel %vm261, %v234, 0
  %v317 = vsel %vm261, %v235, 0
  %v320 = vsel %vm261, %v236, 0
  %v323 = vsel %vm261, %v237, 0
  %v326 = vsel %vm261, %v238, 0
  %v329 = vsel %vm261, %v239, 0
  %v332 = vsel %vm261, %v240, 0
  %v335 = vsel %vm261, %v241, 0
  %v338 = vsel %vm261, %v242, 0
  %v341 = vsel %vm261, %v243, 0
  %v344 = vsel %vm261, %v244, 0
  %v347 = vsel %vm261, %v245, 0
  %v350 = vsel %vm261, %v246, 0
  %v353 = vsel %vm261, %v247, 0
  %v356 = vsel %vm261, %v248, 0
  %358 = vmatprep.subr.bf16.mxu0 0
  %359 = vmatpush1.bf16.msra.mxu0 %v257
  %360 = vmatprep.subr.bf16.mxu0 0
  %361 = vmatpush1.bf16.msra.mxu0 %v258
  %362 = vmatprep.subr.bf16.mxu0 0
  %363 = vmatpush1.bf16.msra.mxu0 0
  %364 = vmatprep.subr.bf16.mxu0 0
  %365 = vmatpush1.bf16.msra.mxu0 0
  %366 = vmatprep.subr.bf16.mxu0 0
  %367 = vmatpush1.bf16.msra.mxu0 0
  %368 = vmatprep.subr.bf16.mxu0 0
  %369 = vmatpush1.bf16.msra.mxu0 0
  %370 = vmatprep.subr.bf16.mxu0 0
  %371 = vmatpush1.bf16.msra.mxu0 0
  %372 = vmatprep.subr.bf16.mxu0 0
  %373 = vmatpush1.bf16.msra.mxu0 0
  %374 = vmatprep.subr.bf16.mxu0 0
  %375 = vmatpush1.bf16.msra.mxu0 0
  %376 = vmatprep.subr.bf16.mxu0 0
  %377 = vmatpush1.bf16.msra.mxu0 0
  %378 = vmatprep.subr.bf16.mxu0 0
  %379 = vmatpush1.bf16.msra.mxu0 0
  %380 = vmatprep.subr.bf16.mxu0 0
  %381 = vmatpush1.bf16.msra.mxu0 0
  %382 = vmatprep.subr.bf16.mxu0 0
  %383 = vmatpush1.bf16.msra.mxu0 0
  %384 = vmatprep.subr.bf16.mxu0 0
  %385 = vmatpush1.bf16.msra.mxu0 0
  %386 = vmatprep.subr.bf16.mxu0 0
  %387 = vmatpush1.bf16.msra.mxu0 0
  %388 = vmatprep.subr.bf16.mxu0 0
  %389 = vmatpush1.bf16.msra.mxu0 0
  %390 = vmatprep.mubr.bf16.mxu0 0
  %391 = vmatmul.mubr.bf16.gmra.mrb[0].mxu0 %v263
  %v392 = vpop.f32.mrb[0].mxu0
  %v393 = vadd.f32 0.0, %v392
  %v394 = vpop.f32.mrb[0].mxu0
  %v395 = vpop.f32.mrb[0].mxu0
  %v396 = vadd.f32 0.0, %v395
  %v397 = vpop.f32.mrb[0].mxu0
  %398 = vmatprep.mubr.bf16.mxu0 0
  %399 = vmatmul.mubr.bf16.gmra.mrb[0].mxu0 %v266
  %v400 = vpop.f32.mrb[0].mxu0
  %v401 = vadd.f32 0.0, %v400
  %v402 = vpop.f32.mrb[0].mxu0
  %v403 = vpop.f32.mrb[0].mxu0
  %v404 = vadd.f32 0.0, %v403
  %v405 = vpop.f32.mrb[0].mxu0
  %406 = vmatprep.mubr.bf16.mxu0 0
  %407 = vmatmul.mubr.bf16.gmra.mrb[0].mxu0 %v269
  %v408 = vpop.f32.mrb[0].mxu0
  %v409 = vadd.f32 0.0, %v408
  %v410 = vpop.f32.mrb[0].mxu0
  %v411 = vpop.f32.mrb[0].mxu0
  %v412 = vadd.f32 0.0, %v411
  %v413 = vpop.f32.mrb[0].mxu0
  %414 = vmatprep.mubr.bf16.mxu0 0
  %415 = vmatmul.mubr.bf16.gmra.mrb[0].mxu0 %v272
  %v416 = vpop.f32.mrb[0].mxu0
  %v417 = vadd.f32 0.0, %v416
  %v418 = vpop.f32.mrb[0].mxu0
  %v419 = vpop.f32.mrb[0].mxu0
  %v420 = vadd.f32 0.0, %v419
  %v421 = vpop.f32.mrb[0].mxu0
  %422 = vmatprep.mubr.bf16.mxu0 0
  %423 = vmatmul.mubr.bf16.gmra.mrb[0].mxu0 %v275
  %v424 = vpop.f32.mrb[0].mxu0
  %v425 = vadd.f32 0.0, %v424
  %v426 = vpop.f32.mrb[0].mxu0
  %v427 = vpop.f32.mrb[0].mxu0
  %v428 = vadd.f32 0.0, %v427
  %v429 = vpop.f32.mrb[0].mxu0
  %430 = vmatprep.mubr.bf16.mxu0 0
  %431 = vmatmul.mubr.bf16.gmra.mrb[0].mxu0 %v278
  %v432 = vpop.f32.mrb[0].mxu0
  %v433 = vadd.f32 0.0, %v432
  %v434 = vpop.f32.mrb[0].mxu0
  %v435 = vpop.f32.mrb[0].mxu0
  %v436 = vadd.f32 0.0, %v435
  %v437 = vpop.f32.mrb[0].mxu0
  %438 = vmatprep.mubr.bf16.mxu0 0
  %439 = vmatmul.mubr.bf16.gmra.mrb[0].mxu0 %v281
  %v440 = vpop.f32.mrb[0].mxu0
  %v441 = vadd.f32 0.0, %v440
  %v442 = vpop.f32.mrb[0].mxu0
  %v443 = vpop.f32.mrb[0].mxu0
  %v444 = vadd.f32 0.0, %v443
  %v445 = vpop.f32.mrb[0].mxu0
  %446 = vmatprep.mubr.bf16.mxu0 0
  %447 = vmatmul.mubr.bf16.gmra.mrb[0].mxu0 %v284
  %v448 = vpop.f32.mrb[0].mxu0
  %v449 = vadd.f32 0.0, %v448
  %v450 = vpop.f32.mrb[0].mxu0
  %v451 = vpop.f32.mrb[0].mxu0
  %v452 = vadd.f32 0.0, %v451
  %v453 = vpop.f32.mrb[0].mxu0
  %454 = vmatprep.mubr.bf16.mxu0 0
  %455 = vmatmul.mubr.bf16.gmra.mrb[0].mxu0 %v287
  %v456 = vpop.f32.mrb[0].mxu0
  %v457 = vadd.f32 0.0, %v456
  %v458 = vpop.f32.mrb[0].mxu0
  %v459 = vpop.f32.mrb[0].mxu0
  %v460 = vadd.f32 0.0, %v459
  %v461 = vpop.f32.mrb[0].mxu0
  %462 = vmatprep.mubr.bf16.mxu0 0
  %463 = vmatmul.mubr.bf16.gmra.mrb[0].mxu0 %v290
  %v464 = vpop.f32.mrb[0].mxu0
  %v465 = vadd.f32 0.0, %v464
  %v466 = vpop.f32.mrb[0].mxu0
  %v467 = vpop.f32.mrb[0].mxu0
  %v468 = vadd.f32 0.0, %v467
  %v469 = vpop.f32.mrb[0].mxu0
  %470 = vmatprep.mubr.bf16.mxu0 0
  %471 = vmatmul.mubr.bf16.gmra.mrb[0].mxu0 %v293
  %v472 = vpop.f32.mrb[0].mxu0
  %v473 = vadd.f32 0.0, %v472
  %v474 = vpop.f32.mrb[0].mxu0
  %v475 = vpop.f32.mrb[0].mxu0
  %v476 = vadd.f32 0.0, %v475
  %v477 = vpop.f32.mrb[0].mxu0
  %478 = vmatprep.mubr.bf16.mxu0 0
  %479 = vmatmul.mubr.bf16.gmra.mrb[0].mxu0 %v296
  %v480 = vpop.f32.mrb[0].mxu0
  %v481 = vadd.f32 0.0, %v480
  %v482 = vpop.f32.mrb[0].mxu0
  %v483 = vpop.f32.mrb[0].mxu0
  %v484 = vadd.f32 0.0, %v483
  %v485 = vpop.f32.mrb[0].mxu0
  %486 = vmatprep.mubr.bf16.mxu0 0
  %487 = vmatmul.mubr.bf16.gmra.mrb[0].mxu0 %v299
  %v488 = vpop.f32.mrb[0].mxu0
  %v489 = vadd.f32 0.0, %v488
  %v490 = vpop.f32.mrb[0].mxu0
  %v491 = vpop.f32.mrb[0].mxu0
  %v492 = vadd.f32 0.0, %v491
  %v493 = vpop.f32.mrb[0].mxu0
  %494 = vmatprep.mubr.bf16.mxu0 0
  %495 = vmatmul.mubr.bf16.gmra.mrb[0].mxu0 %v302
  %v496 = vpop.f32.mrb[0].mxu0
  %v497 = vadd.f32 0.0, %v496
  %v498 = vpop.f32.mrb[0].mxu0
  %v499 = vpop.f32.mrb[0].mxu0
  %v500 = vadd.f32 0.0, %v499
  %v501 = vpop.f32.mrb[0].mxu0
  %502 = vmatprep.mubr.bf16.mxu0 0
  %503 = vmatmul.mubr.bf16.gmra.mrb[0].mxu0 %v305
  %v504 = vpop.f32.mrb[0].mxu0
  %v505 = vadd.f32 0.0, %v504
  %v506 = vpop.f32.mrb[0].mxu0
  %v507 = vpop.f32.mrb[0].mxu0
  %v508 = vadd.f32 0.0, %v507
  %v509 = vpop.f32.mrb[0].mxu0
  %510 = vmatprep.mubr.bf16.mxu0 0
  %511 = vmatmul.mubr.bf16.gmra.mrb[0].mxu0 %v308
  %v512 = vpop.f32.mrb[0].mxu0
  %v513 = vadd.f32 0.0, %v512
  %v514 = vpop.f32.mrb[0].mxu0
  %v515 = vpop.f32.mrb[0].mxu0
  %v516 = vadd.f32 0.0, %v515
  %v517 = vpop.f32.mrb[0].mxu0
  %518 = vmatprep.mubr.bf16.mxu0 0
  %519 = vmatmul.mubr.bf16.gmra.mrb[0].mxu0 %v311
  %v520 = vpop.f32.mrb[0].mxu0
  %v521 = vadd.f32 0.0, %v520
  %v522 = vpop.f32.mrb[0].mxu0
  %v523 = vpop.f32.mrb[0].mxu0
  %v524 = vadd.f32 0.0, %v523
  %v525 = vpop.f32.mrb[0].mxu0
  %526 = vmatprep.mubr.bf16.mxu0 0
  %527 = vmatmul.mubr.bf16.gmra.mrb[0].mxu0 %v314
  %v528 = vpop.f32.mrb[0].mxu0
  %v529 = vadd.f32 0.0, %v528
  %v530 = vpop.f32.mrb[0].mxu0
  %v531 = vpop.f32.mrb[0].mxu0
  %v532 = vadd.f32 0.0, %v531
  %v533 = vpop.f32.mrb[0].mxu0
  %534 = vmatprep.mubr.bf16.mxu0 0
  %535 = vmatmul.mubr.bf16.gmra.mrb[0].mxu0 %v317
  %v536 = vpop.f32.mrb[0].mxu0
  %v537 = vadd.f32 0.0, %v536
  %v538 = vpop.f32.mrb[0].mxu0
  %v539 = vpop.f32.mrb[0].mxu0
  %v540 = vadd.f32 0.0, %v539
  %v541 = vpop.f32.mrb[0].mxu0
  %542 = vmatprep.mubr.bf16.mxu0 0
  %543 = vmatmul.mubr.bf16.gmra.mrb[0].mxu0 %v320
  %v544 = vpop.f32.mrb[0].mxu0
  %v545 = vadd.f32 0.0, %v544
  %v546 = vpop.f32.mrb[0].mxu0
  %v547 = vpop.f32.mrb[0].mxu0
  %v548 = vadd.f32 0.0, %v547
  %v549 = vpop.f32.mrb[0].mxu0
  %550 = vmatprep.mubr.bf16.mxu0 0
  %551 = vmatmul.mubr.bf16.gmra.mrb[0].mxu0 %v323
  %v552 = vpop.f32.mrb[0].mxu0
  %v553 = vadd.f32 0.0, %v552
  %v554 = vpop.f32.mrb[0].mxu0
  %v555 = vpop.f32.mrb[0].mxu0
  %v556 = vadd.f32 0.0, %v555
  %v557 = vpop.f32.mrb[0].mxu0
  %558 = vmatprep.mubr.bf16.mxu0 0
  %559 = vmatmul.mubr.bf16.gmra.mrb[0].mxu0 %v326
  %v560 = vpop.f32.mrb[0].mxu0
  %v561 = vadd.f32 0.0, %v560
  %v562 = vpop.f32.mrb[0].mxu0
  %v563 = vpop.f32.mrb[0].mxu0
  %v564 = vadd.f32 0.0, %v563
  %v565 = vpop.f32.mrb[0].mxu0
  %566 = vmatprep.mubr.bf16.mxu0 0
  %567 = vmatmul.mubr.bf16.gmra.mrb[0].mxu0 %v329
  %v568 = vpop.f32.mrb[0].mxu0
  %v569 = vadd.f32 0.0, %v568
  %v570 = vpop.f32.mrb[0].mxu0
  %v571 = vpop.f32.mrb[0].mxu0
  %v572 = vadd.f32 0.0, %v571
  %v573 = vpop.f32.mrb[0].mxu0
  %574 = vmatprep.mubr.bf16.mxu0 0
  %575 = vmatmul.mubr.bf16.gmra.mrb[0].mxu0 %v332
  %v576 = vpop.f32.mrb[0].mxu0
  %v577 = vadd.f32 0.0, %v576
  %v578 = vpop.f32.mrb[0].mxu0
  %v579 = vpop.f32.mrb[0].mxu0
  %v580 = vadd.f32 0.0, %v579
  %v581 = vpop.f32.mrb[0].mxu0
  %582 = vmatprep.mubr.bf16.mxu0 0
  %583 = vmatmul.mubr.bf16.gmra.mrb[0].mxu0 %v335
  %v584 = vpop.f32.mrb[0].mxu0
  %v585 = vadd.f32 0.0, %v584
  %v586 = vpop.f32.mrb[0].mxu0
  %v587 = vpop.f32.mrb[0].mxu0
  %v588 = vadd.f32 0.0, %v587
  %v589 = vpop.f32.mrb[0].mxu0
  %590 = vmatprep.mubr.bf16.mxu0 0
  %591 = vmatmul.mubr.bf16.gmra.mrb[0].mxu0 %v338
  %v592 = vpop.f32.mrb[0].mxu0
  %v593 = vadd.f32 0.0, %v592
  %v594 = vpop.f32.mrb[0].mxu0
  %v595 = vpop.f32.mrb[0].mxu0
  %v596 = vadd.f32 0.0, %v595
  %v597 = vpop.f32.mrb[0].mxu0
  %598 = vmatprep.mubr.bf16.mxu0 0
  %599 = vmatmul.mubr.bf16.gmra.mrb[0].mxu0 %v341
  %v600 = vpop.f32.mrb[0].mxu0
  %v601 = vadd.f32 0.0, %v600
  %v602 = vpop.f32.mrb[0].mxu0
  %v603 = vpop.f32.mrb[0].mxu0
  %v604 = vadd.f32 0.0, %v603
  %v605 = vpop.f32.mrb[0].mxu0
  %606 = vmatprep.mubr.bf16.mxu0 0
  %607 = vmatmul.mubr.bf16.gmra.mrb[0].mxu0 %v344
  %v608 = vpop.f32.mrb[0].mxu0
  %v609 = vadd.f32 0.0, %v608
  %v610 = vpop.f32.mrb[0].mxu0
  %v611 = vpop.f32.mrb[0].mxu0
  %v612 = vadd.f32 0.0, %v611
  %v613 = vpop.f32.mrb[0].mxu0
  %614 = vmatprep.mubr.bf16.mxu0 0
  %615 = vmatmul.mubr.bf16.gmra.mrb[0].mxu0 %v347
  %v616 = vpop.f32.mrb[0].mxu0
  %v617 = vadd.f32 0.0, %v616
  %v618 = vpop.f32.mrb[0].mxu0
  %v619 = vpop.f32.mrb[0].mxu0
  %v620 = vadd.f32 0.0, %v619
  %v621 = vpop.f32.mrb[0].mxu0
  %622 = vmatprep.mubr.bf16.mxu0 0
  %623 = vmatmul.mubr.bf16.gmra.mrb[0].mxu0 %v350
  %v624 = vpop.f32.mrb[0].mxu0
  %v625 = vadd.f32 0.0, %v624
  %v626 = vpop.f32.mrb[0].mxu0
  %v627 = vpop.f32.mrb[0].mxu0
  %v628 = vadd.f32 0.0, %v627
  %v629 = vpop.f32.mrb[0].mxu0
  %630 = vmatprep.mubr.bf16.mxu0 0
  %631 = vmatmul.mubr.bf16.gmra.mrb[0].mxu0 %v353
  %v632 = vpop.f32.mrb[0].mxu0
  %v633 = vadd.f32 0.0, %v632
  %v634 = vpop.f32.mrb[0].mxu0
  %v635 = vpop.f32.mrb[0].mxu0
  %v636 = vadd.f32 0.0, %v635
  %v637 = vpop.f32.mrb[0].mxu0
  %638 = vmatprep.mubr.bf16.mxu0 0
  %639 = vmatmul.mubr.bf16.gmra.mrb[0].mxu0 %v356
  %v640 = vpop.f32.mrb[0].mxu0
  %v641 = vadd.f32 0.0, %v640
  %v642 = vpop.f32.mrb[0].mxu0
  %v643 = vpop.f32.mrb[0].mxu0
  %v644 = vadd.f32 0.0, %v643
  %v645 = vpop.f32.mrb[0].mxu0
  %646 = vdwg.mxu0
  %v647 = vxor.u32 %v393, 2147483648
  %v648 = vxor.u32 %v396, 2147483648
  %v649 = vxor.u32 %v401, 2147483648
  %v650 = vxor.u32 %v404, 2147483648
  %v651 = vxor.u32 %v409, 2147483648
  %v652 = vxor.u32 %v412, 2147483648
  %v653 = vxor.u32 %v417, 2147483648
  %v654 = vxor.u32 %v420, 2147483648
  %v655 = vxor.u32 %v425, 2147483648
  %v656 = vxor.u32 %v428, 2147483648
  %v657 = vxor.u32 %v433, 2147483648
  %v658 = vxor.u32 %v436, 2147483648
  %v659 = vxor.u32 %v441, 2147483648
  %v660 = vxor.u32 %v444, 2147483648
  %v661 = vxor.u32 %v449, 2147483648
  %v662 = vxor.u32 %v452, 2147483648
  %v663 = vxor.u32 %v457, 2147483648
  %v664 = vxor.u32 %v460, 2147483648
  %v665 = vxor.u32 %v465, 2147483648
  %v666 = vxor.u32 %v468, 2147483648
  %v667 = vxor.u32 %v473, 2147483648
  %v668 = vxor.u32 %v476, 2147483648
  %v669 = vxor.u32 %v481, 2147483648
  %v670 = vxor.u32 %v484, 2147483648
  %v671 = vxor.u32 %v489, 2147483648
  %v672 = vxor.u32 %v492, 2147483648
  %v673 = vxor.u32 %v497, 2147483648
  %v674 = vxor.u32 %v500, 2147483648
  %v675 = vxor.u32 %v505, 2147483648
  %v676 = vxor.u32 %v508, 2147483648
  %v677 = vxor.u32 %v513, 2147483648
  %v678 = vxor.u32 %v516, 2147483648
  %v679 = vxor.u32 %v521, 2147483648
  %v680 = vxor.u32 %v524, 2147483648
  %v681 = vxor.u32 %v529, 2147483648
  %v682 = vxor.u32 %v532, 2147483648
  %v683 = vxor.u32 %v537, 2147483648
  %v684 = vxor.u32 %v540, 2147483648
  %v685 = vxor.u32 %v545, 2147483648
  %v686 = vxor.u32 %v548, 2147483648
  %v687 = vxor.u32 %v553, 2147483648
  %v688 = vxor.u32 %v556, 2147483648
  %v689 = vxor.u32 %v561, 2147483648
  %v690 = vxor.u32 %v564, 2147483648
  %v691 = vxor.u32 %v569, 2147483648
  %v692 = vxor.u32 %v572, 2147483648
  %v693 = vxor.u32 %v577, 2147483648
  %v694 = vxor.u32 %v580, 2147483648
  %v695 = vxor.u32 %v585, 2147483648
  %v696 = vxor.u32 %v588, 2147483648
  %v697 = vxor.u32 %v593, 2147483648
  %v698 = vxor.u32 %v596, 2147483648
  %v699 = vxor.u32 %v601, 2147483648
  %v700 = vxor.u32 %v604, 2147483648
  %v701 = vxor.u32 %v609, 2147483648
  %v702 = vxor.u32 %v612, 2147483648
  %v703 = vxor.u32 %v617, 2147483648
  %v704 = vxor.u32 %v620, 2147483648
  %v705 = vxor.u32 %v625, 2147483648
  %v706 = vxor.u32 %v628, 2147483648
  %v707 = vxor.u32 %v633, 2147483648
  %v708 = vxor.u32 %v636, 2147483648
  %v709 = vxor.u32 %v641, 2147483648
  %v710 = vxor.u32 %v644, 2147483648
  %v711 = vmul.f32 %v647, 1.442695
  %v712 = vpow.pop %v711
  %v713 = vmul.f32 %v648, 1.442695
  %v714 = vpow.pop %v713
  %v715 = vmul.f32 %v649, 1.442695
  %v716 = vpow.pop %v715
  %v717 = vmul.f32 %v650, 1.442695
  %v718 = vpow.pop %v717
  %v719 = vmul.f32 %v651, 1.442695
  %v720 = vpow.pop %v719
  %v721 = vmul.f32 %v652, 1.442695
  %v722 = vpow.pop %v721
  %v723 = vmul.f32 %v653, 1.442695
  %v724 = vpow.pop %v723
  %v725 = vmul.f32 %v654, 1.442695
  %v726 = vpow.pop %v725
  %v727 = vmul.f32 %v655, 1.442695
  %v728 = vpow.pop %v727
  %v729 = vmul.f32 %v656, 1.442695
  %v730 = vpow.pop %v729
  %v731 = vmul.f32 %v657, 1.442695
  %v732 = vpow.pop %v731
  %v733 = vmul.f32 %v658, 1.442695
  %v734 = vpow.pop %v733
  %v735 = vmul.f32 %v659, 1.442695
  %v736 = vpow.pop %v735
  %v737 = vmul.f32 %v660, 1.442695
  %v738 = vpow.pop %v737
  %v739 = vmul.f32 %v661, 1.442695
  %v740 = vpow.pop %v739
  %v741 = vmul.f32 %v662, 1.442695
  %v742 = vpow.pop %v741
  %v743 = vmul.f32 %v663, 1.442695
  %v744 = vpow.pop %v743
  %v745 = vmul.f32 %v664, 1.442695
  %v746 = vpow.pop %v745
  %v747 = vmul.f32 %v665, 1.442695
  %v748 = vpow.pop %v747
  %v749 = vmul.f32 %v666, 1.442695
  %v750 = vpow.pop %v749
  %v751 = vmul.f32 %v667, 1.442695
  %v752 = vpow.pop %v751
  %v753 = vmul.f32 %v668, 1.442695
  %v754 = vpow.pop %v753
  %v755 = vmul.f32 %v669, 1.442695
  %v756 = vpow.pop %v755
  %v757 = vmul.f32 %v670, 1.442695
  %v758 = vpow.pop %v757
  %v759 = vmul.f32 %v671, 1.442695
  %v760 = vpow.pop %v759
  %v761 = vmul.f32 %v672, 1.442695
  %v762 = vpow.pop %v761
  %v763 = vmul.f32 %v673, 1.442695
  %v764 = vpow.pop %v763
  %v765 = vmul.f32 %v674, 1.442695
  %v766 = vpow.pop %v765
  %v767 = vmul.f32 %v675, 1.442695
  %v768 = vpow.pop %v767
  %v769 = vmul.f32 %v676, 1.442695
  %v770 = vpow.pop %v769
  %v771 = vmul.f32 %v677, 1.442695
  %v772 = vpow.pop %v771
  %v773 = vmul.f32 %v678, 1.442695
  %v774 = vpow.pop %v773
  %v775 = vmul.f32 %v679, 1.442695
  %v776 = vpow.pop %v775
  %v777 = vmul.f32 %v680, 1.442695
  %v778 = vpow.pop %v777
  %v779 = vmul.f32 %v681, 1.442695
  %v780 = vpow.pop %v779
  %v781 = vmul.f32 %v682, 1.442695
  %v782 = vpow.pop %v781
  %v783 = vmul.f32 %v683, 1.442695
  %v784 = vpow.pop %v783
  %v785 = vmul.f32 %v684, 1.442695
  %v786 = vpow.pop %v785
  %v787 = vmul.f32 %v685, 1.442695
  %v788 = vpow.pop %v787
  %v789 = vmul.f32 %v686, 1.442695
  %v790 = vpow.pop %v789
  %v791 = vmul.f32 %v687, 1.442695
  %v792 = vpow.pop %v791
  %v793 = vmul.f32 %v688, 1.442695
  %v794 = vpow.pop %v793
  %v795 = vmul.f32 %v689, 1.442695
  %v796 = vpow.pop %v795
  %v797 = vmul.f32 %v690, 1.442695
  %v798 = vpow.pop %v797
  %v799 = vmul.f32 %v691, 1.442695
  %v800 = vpow.pop %v799
  %v801 = vmul.f32 %v692, 1.442695
  %v802 = vpow.pop %v801
  %v803 = vmul.f32 %v693, 1.442695
  %v804 = vpow.pop %v803
  %v805 = vmul.f32 %v694, 1.442695
  %v806 = vpow.pop %v805
  %v807 = vmul.f32 %v695, 1.442695
  %v808 = vpow.pop %v807
  %v809 = vmul.f32 %v696, 1.442695
  %v810 = vpow.pop %v809
  %v811 = vmul.f32 %v697, 1.442695
  %v812 = vpow.pop %v811
  %v813 = vmul.f32 %v698, 1.442695
  %v814 = vpow.pop %v813
  %v815 = vmul.f32 %v699, 1.442695
  %v816 = vpow.pop %v815
  %v817 = vmul.f32 %v700, 1.442695
  %v818 = vpow.pop %v817
  %v819 = vmul.f32 %v701, 1.442695
  %v820 = vpow.pop %v819
  %v821 = vmul.f32 %v702, 1.442695
  %v822 = vpow.pop %v821
  %v823 = vmul.f32 %v703, 1.442695
  %v824 = vpow.pop %v823
  %v825 = vmul.f32 %v704, 1.442695
  %v826 = vpow.pop %v825
  %v827 = vmul.f32 %v705, 1.442695
  %v828 = vpow.pop %v827
  %v829 = vmul.f32 %v706, 1.442695
  %v830 = vpow.pop %v829
  %v831 = vmul.f32 %v707, 1.442695
  %v832 = vpow.pop %v831
  %v833 = vmul.f32 %v708, 1.442695
  %v834 = vpow.pop %v833
  %v835 = vmul.f32 %v709, 1.442695
  %v836 = vpow.pop %v835
  %v837 = vmul.f32 %v710, 1.442695
  %v838 = vpow.pop %v837
  %v839 = vadd.f32 %v712, 1.0
  %v840 = vadd.f32 %v714, 1.0
  %v841 = vadd.f32 %v716, 1.0
  %v842 = vadd.f32 %v718, 1.0
  %v843 = vadd.f32 %v720, 1.0
  %v844 = vadd.f32 %v722, 1.0
  %v845 = vadd.f32 %v724, 1.0
  %v846 = vadd.f32 %v726, 1.0
  %v847 = vadd.f32 %v728, 1.0
  %v848 = vadd.f32 %v730, 1.0
  %v849 = vadd.f32 %v732, 1.0
  %v850 = vadd.f32 %v734, 1.0
  %v851 = vadd.f32 %v736, 1.0
  %v852 = vadd.f32 %v738, 1.0
  %v853 = vadd.f32 %v740, 1.0
  %v854 = vadd.f32 %v742, 1.0
  %v855 = vadd.f32 %v744, 1.0
  %v856 = vadd.f32 %v746, 1.0
  %v857 = vadd.f32 %v748, 1.0
  %v858 = vadd.f32 %v750, 1.0
  %v859 = vadd.f32 %v752, 1.0
  %v860 = vadd.f32 %v754, 1.0
  %v861 = vadd.f32 %v756, 1.0
  %v862 = vadd.f32 %v758, 1.0
  %v863 = vadd.f32 %v760, 1.0
  %v864 = vadd.f32 %v762, 1.0
  %v865 = vadd.f32 %v764, 1.0
  %v866 = vadd.f32 %v766, 1.0
  %v867 = vadd.f32 %v768, 1.0
  %v868 = vadd.f32 %v770, 1.0
  %v869 = vadd.f32 %v772, 1.0
  %v870 = vadd.f32 %v774, 1.0
  %v871 = vadd.f32 %v776, 1.0
  %v872 = vadd.f32 %v778, 1.0
  %v873 = vadd.f32 %v780, 1.0
  %v874 = vadd.f32 %v782, 1.0
  %v875 = vadd.f32 %v784, 1.0
  %v876 = vadd.f32 %v786, 1.0
  %v877 = vadd.f32 %v788, 1.0
  %v878 = vadd.f32 %v790, 1.0
  %v879 = vadd.f32 %v792, 1.0
  %v880 = vadd.f32 %v794, 1.0
  %v881 = vadd.f32 %v796, 1.0
  %v882 = vadd.f32 %v798, 1.0
  %v883 = vadd.f32 %v800, 1.0
  %v884 = vadd.f32 %v802, 1.0
  %v885 = vadd.f32 %v804, 1.0
  %v886 = vadd.f32 %v806, 1.0
  %v887 = vadd.f32 %v808, 1.0
  %v888 = vadd.f32 %v810, 1.0
  %v889 = vadd.f32 %v812, 1.0
  %v890 = vadd.f32 %v814, 1.0
  %v891 = vadd.f32 %v816, 1.0
  %v892 = vadd.f32 %v818, 1.0
  %v893 = vadd.f32 %v820, 1.0
  %v894 = vadd.f32 %v822, 1.0
  %v895 = vadd.f32 %v824, 1.0
  %v896 = vadd.f32 %v826, 1.0
  %v897 = vadd.f32 %v828, 1.0
  %v898 = vadd.f32 %v830, 1.0
  %v899 = vadd.f32 %v832, 1.0
  %v900 = vadd.f32 %v834, 1.0
  %v901 = vadd.f32 %v836, 1.0
  %v902 = vadd.f32 %v838, 1.0
  %v903 = vrcp.pop %v839
  %v904 = vmul.f32 1.0, %v903
  %v905 = vrcp.pop %v840
  %v906 = vmul.f32 1.0, %v905
  %v907 = vrcp.pop %v841
  %v908 = vmul.f32 1.0, %v907
  %v909 = vrcp.pop %v842
  %v910 = vmul.f32 1.0, %v909
  %v911 = vrcp.pop %v843
  %v912 = vmul.f32 1.0, %v911
  %v913 = vrcp.pop %v844
  %v914 = vmul.f32 1.0, %v913
  %v915 = vrcp.pop %v845
  %v916 = vmul.f32 1.0, %v915
  %v917 = vrcp.pop %v846
  %v918 = vmul.f32 1.0, %v917
  %v919 = vrcp.pop %v847
  %v920 = vmul.f32 1.0, %v919
  %v921 = vrcp.pop %v848
  %v922 = vmul.f32 1.0, %v921
  %v923 = vrcp.pop %v849
  %v924 = vmul.f32 1.0, %v923
  %v925 = vrcp.pop %v850
  %v926 = vmul.f32 1.0, %v925
  %v927 = vrcp.pop %v851
  %v928 = vmul.f32 1.0, %v927
  %v929 = vrcp.pop %v852
  %v930 = vmul.f32 1.0, %v929
  %v931 = vrcp.pop %v853
  %v932 = vmul.f32 1.0, %v931
  %v933 = vrcp.pop %v854
  %v934 = vmul.f32 1.0, %v933
  %v935 = vrcp.pop %v855
  %v936 = vmul.f32 1.0, %v935
  %v937 = vrcp.pop %v856
  %v938 = vmul.f32 1.0, %v937
  %v939 = vrcp.pop %v857
  %v940 = vmul.f32 1.0, %v939
  %v941 = vrcp.pop %v858
  %v942 = vmul.f32 1.0, %v941
  %v943 = vrcp.pop %v859
  %v944 = vmul.f32 1.0, %v943
  %v945 = vrcp.pop %v860
  %v946 = vmul.f32 1.0, %v945
  %v947 = vrcp.pop %v861
  %v948 = vmul.f32 1.0, %v947
  %v949 = vrcp.pop %v862
  %v950 = vmul.f32 1.0, %v949
  %v951 = vrcp.pop %v863
  %v952 = vmul.f32 1.0, %v951
  %v953 = vrcp.pop %v864
  %v954 = vmul.f32 1.0, %v953
  %v955 = vrcp.pop %v865
  %v956 = vmul.f32 1.0, %v955
  %v957 = vrcp.pop %v866
  %v958 = vmul.f32 1.0, %v957
  %v959 = vrcp.pop %v867
  %v960 = vmul.f32 1.0, %v959
  %v961 = vrcp.pop %v868
  %v962 = vmul.f32 1.0, %v961
  %v963 = vrcp.pop %v869
  %v964 = vmul.f32 1.0, %v963
  %v965 = vrcp.pop %v870
  %v966 = vmul.f32 1.0, %v965
  %v967 = vrcp.pop %v871
  %v968 = vmul.f32 1.0, %v967
  %v969 = vrcp.pop %v872
  %v970 = vmul.f32 1.0, %v969
  %v971 = vrcp.pop %v873
  %v972 = vmul.f32 1.0, %v971
  %v973 = vrcp.pop %v874
  %v974 = vmul.f32 1.0, %v973
  %v975 = vrcp.pop %v875
  %v976 = vmul.f32 1.0, %v975
  %v977 = vrcp.pop %v876
  %v978 = vmul.f32 1.0, %v977
  %v979 = vrcp.pop %v877
  %v980 = vmul.f32 1.0, %v979
  %v981 = vrcp.pop %v878
  %v982 = vmul.f32 1.0, %v981
  %v983 = vrcp.pop %v879
  %v984 = vmul.f32 1.0, %v983
  %v985 = vrcp.pop %v880
  %v986 = vmul.f32 1.0, %v985
  %v987 = vrcp.pop %v881
  %v988 = vmul.f32 1.0, %v987
  %v989 = vrcp.pop %v882
  %v990 = vmul.f32 1.0, %v989
  %v991 = vrcp.pop %v883
  %v992 = vmul.f32 1.0, %v991
  %v993 = vrcp.pop %v884
  %v994 = vmul.f32 1.0, %v993
  %v995 = vrcp.pop %v885
  %v996 = vmul.f32 1.0, %v995
  %v997 = vrcp.pop %v886
  %v998 = vmul.f32 1.0, %v997
  %v999 = vrcp.pop %v887
  %v1000 = vmul.f32 1.0, %v999
  %v1001 = vrcp.pop %v888
  %v1002 = vmul.f32 1.0, %v1001
  %v1003 = vrcp.pop %v889
  %v1004 = vmul.f32 1.0, %v1003
  %v1005 = vrcp.pop %v890
  %v1006 = vmul.f32 1.0, %v1005
  %v1007 = vrcp.pop %v891
  %v1008 = vmul.f32 1.0, %v1007
  %v1009 = vrcp.pop %v892
  %v1010 = vmul.f32 1.0, %v1009
  %v1011 = vrcp.pop %v893
  %v1012 = vmul.f32 1.0, %v1011
  %v1013 = vrcp.pop %v894
  %v1014 = vmul.f32 1.0, %v1013
  %v1015 = vrcp.pop %v895
  %v1016 = vmul.f32 1.0, %v1015
  %v1017 = vrcp.pop %v896
  %v1018 = vmul.f32 1.0, %v1017
  %v1019 = vrcp.pop %v897
  %v1020 = vmul.f32 1.0, %v1019
  %v1021 = vrcp.pop %v898
  %v1022 = vmul.f32 1.0, %v1021
  %v1023 = vrcp.pop %v899
  %v1024 = vmul.f32 1.0, %v1023
  %v1025 = vrcp.pop %v900
  %v1026 = vmul.f32 1.0, %v1025
  %v1027 = vrcp.pop %v901
  %v1028 = vmul.f32 1.0, %v1027
  %v1029 = vrcp.pop %v902
  %v1030 = vmul.f32 1.0, %v1029
  %v1031 = vmul.f32 %v393, %v904
  %v1032 = vmul.f32 %v396, %v906
  %v1033 = vmul.f32 %v401, %v908
  %v1034 = vmul.f32 %v404, %v910
  %v1035 = vmul.f32 %v409, %v912
  %v1036 = vmul.f32 %v412, %v914
  %v1037 = vmul.f32 %v417, %v916
  %v1038 = vmul.f32 %v420, %v918
  %v1039 = vmul.f32 %v425, %v920
  %v1040 = vmul.f32 %v428, %v922
  %v1041 = vmul.f32 %v433, %v924
  %v1042 = vmul.f32 %v436, %v926
  %v1043 = vmul.f32 %v441, %v928
  %v1044 = vmul.f32 %v444, %v930
  %v1045 = vmul.f32 %v449, %v932
  %v1046 = vmul.f32 %v452, %v934
  %v1047 = vmul.f32 %v457, %v936
  %v1048 = vmul.f32 %v460, %v938
  %v1049 = vmul.f32 %v465, %v940
  %v1050 = vmul.f32 %v468, %v942
  %v1051 = vmul.f32 %v473, %v944
  %v1052 = vmul.f32 %v476, %v946
  %v1053 = vmul.f32 %v481, %v948
  %v1054 = vmul.f32 %v484, %v950
  %v1055 = vmul.f32 %v489, %v952
  %v1056 = vmul.f32 %v492, %v954
  %v1057 = vmul.f32 %v497, %v956
  %v1058 = vmul.f32 %v500, %v958
  %v1059 = vmul.f32 %v505, %v960
  %v1060 = vmul.f32 %v508, %v962
  %v1061 = vmul.f32 %v513, %v964
  %v1062 = vmul.f32 %v516, %v966
  %v1063 = vmul.f32 %v521, %v968
  %v1064 = vmul.f32 %v524, %v970
  %v1065 = vmul.f32 %v529, %v972
  %v1066 = vmul.f32 %v532, %v974
  %v1067 = vmul.f32 %v537, %v976
  %v1068 = vmul.f32 %v540, %v978
  %v1069 = vmul.f32 %v545, %v980
  %v1070 = vmul.f32 %v548, %v982
  %v1071 = vmul.f32 %v553, %v984
  %v1072 = vmul.f32 %v556, %v986
  %v1073 = vmul.f32 %v561, %v988
  %v1074 = vmul.f32 %v564, %v990
  %v1075 = vmul.f32 %v569, %v992
  %v1076 = vmul.f32 %v572, %v994
  %v1077 = vmul.f32 %v577, %v996
  %v1078 = vmul.f32 %v580, %v998
  %v1079 = vmul.f32 %v585, %v1000
  %v1080 = vmul.f32 %v588, %v1002
  %v1081 = vmul.f32 %v593, %v1004
  %v1082 = vmul.f32 %v596, %v1006
  %v1083 = vmul.f32 %v601, %v1008
  %v1084 = vmul.f32 %v604, %v1010
  %v1085 = vmul.f32 %v609, %v1012
  %v1086 = vmul.f32 %v612, %v1014
  %v1087 = vmul.f32 %v617, %v1016
  %v1088 = vmul.f32 %v620, %v1018
  %v1089 = vmul.f32 %v625, %v1020
  %v1090 = vmul.f32 %v628, %v1022
  %v1091 = vmul.f32 %v633, %v1024
  %v1092 = vmul.f32 %v636, %v1026
  %v1093 = vmul.f32 %v641, %v1028
  %v1094 = vmul.f32 %v644, %v1030
  %v1095 = vld [vmem:[%s2] sm:$0xff]
  %v1097 = vcombine.high %v1095, %v1095
  %v1099 = vunpack.c.l.s4 1983009808
  %v1100 = vunpack.c.0.s8 %v1099
  %v1101 = vlaneseq
  %v1102 = vshrl.u32 %v1101, 7
  %v1103 = vsub.s32 %v1100, %v1102
  %v1104 = vrot.slane %v1095, %v1103
  %v1106 = vunpack.c.l.s4 1983009808
  %v1107 = vunpack.c.0.s8 %v1106
  %v1108 = vlaneseq
  %v1109 = vshrl.u32 %v1108, 7
  %v1110 = vsub.s32 %v1107, %v1109
  %v1111 = vrot.slane %v1097, %v1110
  %v1112 = vcombine.high %v1104, %v1104
  %v1113 = vcombine.high %v1111, %v1111
  %1118 = vmatprep.subr.mxu0 0.0
  %1119 = vmatpush1.msra.mxu0 %v1031
  %1120 = vmatprep.subr.mxu0 0.0
  %1121 = vmatpush1.msra.mxu0 %v1032
  %1122 = vmatprep.subr.mxu0 0.0
  %1123 = vmatpush1.msra.mxu0 %v1033
  %1124 = vmatprep.subr.mxu0 0.0
  %1125 = vmatpush1.msra.mxu0 %v1034
  %1126 = vmatprep.subr.mxu0 0.0
  %1127 = vmatpush1.msra.mxu0 %v1035
  %1128 = vmatprep.subr.mxu0 0.0
  %1129 = vmatpush1.msra.mxu0 %v1036
  %1130 = vmatprep.subr.mxu0 0.0
  %1131 = vmatpush1.msra.mxu0 %v1037
  %1132 = vmatprep.subr.mxu0 0.0
  %1133 = vmatpush1.msra.mxu0 %v1038
  %1134 = vmatprep.subr.mxu0 0.0
  %1135 = vmatpush1.msra.mxu0 %v1039
  %1136 = vmatprep.subr.mxu0 0.0
  %1137 = vmatpush1.msra.mxu0 %v1040
  %1138 = vmatprep.subr.mxu0 0.0
  %1139 = vmatpush1.msra.mxu0 %v1041
  %1140 = vmatprep.subr.mxu0 0.0
  %1141 = vmatpush1.msra.mxu0 %v1042
  %1142 = vmatprep.subr.mxu0 0.0
  %1143 = vmatpush1.msra.mxu0 %v1043
  %1144 = vmatprep.subr.mxu0 0.0
  %1145 = vmatpush1.msra.mxu0 %v1044
  %1146 = vmatprep.subr.mxu0 0.0
  %1147 = vmatpush1.msra.mxu0 %v1045
  %1148 = vmatprep.subr.mxu0 0.0
  %1149 = vmatpush1.msra.mxu0 %v1046
  %1150 = vmatprep.subr.mxu0 0.0
  %1151 = vmatpush1.msra.mxu0 %v1047
  %1152 = vmatprep.subr.mxu0 0.0
  %1153 = vmatpush1.msra.mxu0 %v1048
  %1154 = vmatprep.subr.mxu0 0.0
  %1155 = vmatpush1.msra.mxu0 %v1049
  %1156 = vmatprep.subr.mxu0 0.0
  %1157 = vmatpush1.msra.mxu0 %v1050
  %1158 = vmatprep.subr.mxu0 0.0
  %1159 = vmatpush1.msra.mxu0 %v1051
  %1160 = vmatprep.subr.mxu0 0.0
  %1161 = vmatpush1.msra.mxu0 %v1052
  %1162 = vmatprep.subr.mxu0 0.0
  %1163 = vmatpush1.msra.mxu0 %v1053
  %1164 = vmatprep.subr.mxu0 0.0
  %1165 = vmatpush1.msra.mxu0 %v1054
  %1166 = vmatprep.subr.mxu0 0.0
  %1167 = vmatpush1.msra.mxu0 %v1055
  %1168 = vmatprep.subr.mxu0 0.0
  %1169 = vmatpush1.msra.mxu0 %v1056
  %1170 = vmatprep.subr.mxu0 0.0
  %1171 = vmatpush1.msra.mxu0 %v1057
  %1172 = vmatprep.subr.mxu0 0.0
  %1173 = vmatpush1.msra.mxu0 %v1058
  %1174 = vmatprep.subr.mxu0 0.0
  %1175 = vmatpush1.msra.mxu0 %v1059
  %1176 = vmatprep.subr.mxu0 0.0
  %1177 = vmatpush1.msra.mxu0 %v1060
  %1178 = vmatprep.subr.mxu0 0.0
  %1179 = vmatpush1.msra.mxu0 %v1061
  %1180 = vmatprep.subr.mxu0 0.0
  %1181 = vmatpush1.msra.mxu0 %v1062
  %1182 = vmatprep.mubr.f32.mxu0 %v1112
  %1183 = vmatmul.mubr.f32.gmra.mrb[0].mxu0 %v1104
  %v1184 = vpop.f32.mrb[0].mxu0
  %v1185 = vadd.f32 0.0, %v1184
  %v1186 = vpop.f32.mrb[0].mxu0
  %1187 = vdwg.mxu0
  %1188 = vmatprep.subr.mxu0 0.0
  %1189 = vmatpush1.msra.mxu0 %v1063
  %1190 = vmatprep.subr.mxu0 0.0
  %1191 = vmatpush1.msra.mxu0 %v1064
  %1192 = vmatprep.subr.mxu0 0.0
  %1193 = vmatpush1.msra.mxu0 %v1065
  %1194 = vmatprep.subr.mxu0 0.0
  %1195 = vmatpush1.msra.mxu0 %v1066
  %1196 = vmatprep.subr.mxu0 0.0
  %1197 = vmatpush1.msra.mxu0 %v1067
  %1198 = vmatprep.subr.mxu0 0.0
  %1199 = vmatpush1.msra.mxu0 %v1068
  %1200 = vmatprep.subr.mxu0 0.0
  %1201 = vmatpush1.msra.mxu0 %v1069
  %1202 = vmatprep.subr.mxu0 0.0
  %1203 = vmatpush1.msra.mxu0 %v1070
  %1204 = vmatprep.subr.mxu0 0.0
  %1205 = vmatpush1.msra.mxu0 %v1071
  %1206 = vmatprep.subr.mxu0 0.0
  %1207 = vmatpush1.msra.mxu0 %v1072
  %1208 = vmatprep.subr.mxu0 0.0
  %1209 = vmatpush1.msra.mxu0 %v1073
  %1210 = vmatprep.subr.mxu0 0.0
  %1211 = vmatpush1.msra.mxu0 %v1074
  %1212 = vmatprep.subr.mxu0 0.0
  %1213 = vmatpush1.msra.mxu0 %v1075
  %1214 = vmatprep.subr.mxu0 0.0
  %1215 = vmatpush1.msra.mxu0 %v1076
  %1216 = vmatprep.subr.mxu0 0.0
  %1217 = vmatpush1.msra.mxu0 %v1077
  %1218 = vmatprep.subr.mxu0 0.0
  %1219 = vmatpush1.msra.mxu0 %v1078
  %1220 = vmatprep.subr.mxu0 0.0
  %1221 = vmatpush1.msra.mxu0 %v1079
  %1222 = vmatprep.subr.mxu0 0.0
  %1223 = vmatpush1.msra.mxu0 %v1080
  %1224 = vmatprep.subr.mxu0 0.0
  %1225 = vmatpush1.msra.mxu0 %v1081
  %1226 = vmatprep.subr.mxu0 0.0
  %1227 = vmatpush1.msra.mxu0 %v1082
  %1228 = vmatprep.subr.mxu0 0.0
  %1229 = vmatpush1.msra.mxu0 %v1083
  %1230 = vmatprep.subr.mxu0 0.0
  %1231 = vmatpush1.msra.mxu0 %v1084
  %1232 = vmatprep.subr.mxu0 0.0
  %1233 = vmatpush1.msra.mxu0 %v1085
  %1234 = vmatprep.subr.mxu0 0.0
  %1235 = vmatpush1.msra.mxu0 %v1086
  %1236 = vmatprep.subr.mxu0 0.0
  %1237 = vmatpush1.msra.mxu0 %v1087
  %1238 = vmatprep.subr.mxu0 0.0
  %1239 = vmatpush1.msra.mxu0 %v1088
  %1240 = vmatprep.subr.mxu0 0.0
  %1241 = vmatpush1.msra.mxu0 %v1089
  %1242 = vmatprep.subr.mxu0 0.0
  %1243 = vmatpush1.msra.mxu0 %v1090
  %1244 = vmatprep.subr.mxu0 0.0
  %1245 = vmatpush1.msra.mxu0 %v1091
  %1246 = vmatprep.subr.mxu0 0.0
  %1247 = vmatpush1.msra.mxu0 %v1092
  %1248 = vmatprep.subr.mxu0 0.0
  %1249 = vmatpush1.msra.mxu0 %v1093
  %1250 = vmatprep.subr.mxu0 0.0
  %1251 = vmatpush1.msra.mxu0 %v1094
  %1252 = vmatprep.mubr.f32.mxu0 %v1113
  %1253 = vmatmul.mubr.f32.gmra.mrb[0].mxu0 %v1111
  %v1254 = vpop.f32.mrb[0].mxu0
  %v1255 = vadd.f32 %v1185, %v1254
  %v1256 = vpop.f32.mrb[0].mxu0
  %1257 = vdwg.mxu0
  %v1258 = vpack.c.bf16 %v1255, %v1255
  %v1259 = vld [vmem:[%s3] sm:$0xf]
  %v1260 = vld [vmem:[%s3 + $0x4] sm:$0xf]
  %v1261 = vld [vmem:[%s3 + $0x8] sm:$0xf]
  %v1262 = vld [vmem:[%s3 + $0xc] sm:$0xf]
  %v1263 = vld [vmem:[%s4] sm:$0x1]
  %v1265 = vlaneseq
  %v1266 = vshrl.u32 %v1265, 7
  %v1267 = vsub.s32 0, %v1266
  %v1268 = vrot.slane %v1263, %v1267
  %v1274 = vunpack.c.l.b16 %v1259
  %v1275 = vunpack.c.l.b16 %v1260
  %v1276 = vunpack.c.l.b16 %v1261
  %v1277 = vunpack.c.l.b16 %v1262
  %v1278 = vpack.c.b16 %v1275, %v1274
  %v1279 = vpack.c.b16 %v1277, %v1276
  %v1283 = vsel %vm261, %v1258, 0
  %1285 = vmatprep.subr.bf16.mxu0 0
  %1286 = vmatpush1.bf16.msra.mxu0 %v1278
  %1287 = vmatprep.subr.bf16.mxu0 0
  %1288 = vmatpush1.bf16.msra.mxu0 %v1279
  %1289 = vmatprep.subr.bf16.mxu0 0
  %1290 = vmatpush1.bf16.msra.mxu0 0
  %1291 = vmatprep.subr.bf16.mxu0 0
  %1292 = vmatpush1.bf16.msra.mxu0 0
  %1293 = vmatprep.subr.bf16.mxu0 0
  %1294 = vmatpush1.bf16.msra.mxu0 0
  %1295 = vmatprep.subr.bf16.mxu0 0
  %1296 = vmatpush1.bf16.msra.mxu0 0
  %1297 = vmatprep.subr.bf16.mxu0 0
  %1298 = vmatpush1.bf16.msra.mxu0 0
  %1299 = vmatprep.subr.bf16.mxu0 0
  %1300 = vmatpush1.bf16.msra.mxu0 0
  %1301 = vmatprep.subr.bf16.mxu0 0
  %1302 = vmatpush1.bf16.msra.mxu0 0
  %1303 = vmatprep.subr.bf16.mxu0 0
  %1304 = vmatpush1.bf16.msra.mxu0 0
  %1305 = vmatprep.subr.bf16.mxu0 0
  %1306 = vmatpush1.bf16.msra.mxu0 0
  %1307 = vmatprep.subr.bf16.mxu0 0
  %1308 = vmatpush1.bf16.msra.mxu0 0
  %1309 = vmatprep.subr.bf16.mxu0 0
  %1310 = vmatpush1.bf16.msra.mxu0 0
  %1311 = vmatprep.subr.bf16.mxu0 0
  %1312 = vmatpush1.bf16.msra.mxu0 0
  %1313 = vmatprep.subr.bf16.mxu0 0
  %1314 = vmatpush1.bf16.msra.mxu0 0
  %1315 = vmatprep.subr.bf16.mxu0 0
  %1316 = vmatpush1.bf16.msra.mxu0 0
  %1317 = vmatprep.mubr.bf16.mxu0 0
  %1318 = vmatmul.mubr.bf16.gmra.mrb[0].mxu0 %v1283
  %v1319 = vpop.f32.mrb[0].mxu0
  %v1320 = vadd.f32 %v1268, %v1319
  %v1321 = vpop.f32.mrb[0].mxu0
  %v1322 = vpop.f32.mrb[0].mxu0
  %v1323 = vpop.f32.mrb[0].mxu0
  %1324 = vdwg.mxu0
  %v1325 = vxor.u32 %v1320, 2147483648
  %v1326 = vmul.f32 %v1325, 1.442695
  %v1327 = vpow.pop %v1326
  %v1328 = vadd.f32 %v1327, 1.0
  %v1329 = vrcp.pop %v1328
  %v1330 = vmul.f32 1.0, %v1329
  %v1331 = vtanh.pop %v1320
  %1333 = vrot.lane.b32.xlu0 %v1331, 112
  %v1334 = vpop.permute.xlu0 %1333
  %v1336 = vmul.f32 %v1330, %v1334
  %v1337 = vtanh.pop %v1336
  %1339 = vrot.lane.b32.xlu0 %v1337, 32
  %v1340 = vpop.permute.xlu0 %1339
  %v1342 = vmul.f32 %v1330, %v1340
  %1344 = vrot.lane.b32.xlu0 %v1342, 96
  %v1345 = vpop.permute.xlu0 %1344
  %1348 = vrot.lane.b32.xlu0 %v1336, 16
  %v1349 = vpop.permute.xlu0 %1348
  %vm1351 = vcmask 130048
  %v1352 = vsel %vm1351, %v1345, %v1349
  %v1353 = vsel %vm261, %v1352, 0.0
  %1354 = vst [vmem:[%s5] sm:$0x3] %v1353
  // Predicated region
  $region22: #{effnet_model_forward.1} parent=0 // pred_check
    _
  $region23: #{effnet_model_forward.1} parent=0 // pred_check_branch
    %1356 = sbr.rel (0) target = $region25
  $region24: #{effnet_model_forward.1} parent=0 // pred_region
    _
  $region25: #{effnet_model_forward.1} parent=0 // pred_fallthru
    _
  // Predicated region
  $region26: #{effnet_model_forward.1} parent=0 // pred_check
    _
  $region27: #{effnet_model_forward.1} parent=0 // pred_check_branch
    %1358 = sbr.rel (0) target = $region29
  $region28: #{effnet_model_forward.1} parent=0 // pred_region
    _
  $region29: #{effnet_model_forward.1} parent=0 // pred_fallthru
    _

</llo_original>
